<compile_context>
chip_gen: v5e
topology: v5e:2x2
jax: 0.10.0
libtpu: 0.0.40
codegen_flags: <defaults>
</compile_context>

<pallas_src>
import functools

import jax
import jax.numpy as jnp
from jax.experimental import pallas as pl
from jax.experimental.pallas import tpu as pltpu


def _attention_kernel(qw_ref, len_ref, c_ref, z_ref, m_ref, l_ref, acc_ref):
    """One (batch-block, T-block) grid step.

    qw_ref  : VMEM (bb, D)   f32    q @ W (precomputed in the wrapper)
    len_ref : VMEM (bb, 1)   int32  encoder lengths
    c_ref   : VMEM (bb, tT, D)      encoder-output tile (streamed from HBM)
    z_ref   : VMEM (bb, D)          output context vectors (written on last T step)
    m_ref   : VMEM (bb, 1)   f32    running max          (carry over T blocks)
    l_ref   : VMEM (bb, 1)   f32    running sum(exp)     (carry over T blocks)
    acc_ref : VMEM (bb, D)   f32    running unnormalized weighted sum of c
    """
    kt = pl.program_id(1)
    tT = c_ref.shape[1]

    @pl.when(kt == 0)
    def _():
        m_ref[...] = jnp.full(m_ref.shape, -jnp.inf, jnp.float32)
        l_ref[...] = jnp.zeros(l_ref.shape, jnp.float32)
        acc_ref[...] = jnp.zeros(acc_ref.shape, jnp.float32)

    qw = qw_ref[...]                                     # (bb, D)    f32
    c = c_ref[...].astype(jnp.float32)                   # (bb, tT, D) f32 accumulate

    # scores s[b, t] = sum_d qw[b, d] * c[b, t, d]   (VPU mul + lane reduce)
    s = jnp.sum(qw[:, None, :] * c, axis=-1)             # (bb, tT)   f32

    # Variable-length context mask.  Large finite negative instead of -inf so
    # length == 0 rows (and garbage boundary-block rows, which are discarded)
    # stay NaN-free.
    lens = len_ref[...]                                  # (bb, 1) int32
    t_idx = kt * tT + jax.lax.broadcasted_iota(jnp.int32, s.shape, 1)
    s = jnp.where(t_idx < lens, s, jnp.float32(-1e30))

    # Online-softmax update (carries live in VMEM scratch across T blocks).
    m_old = m_ref[...]                                   # (bb, 1)
    m_new = jnp.maximum(m_old, jnp.max(s, axis=-1, keepdims=True))
    alpha = jnp.exp(m_old - m_new)                       # (bb, 1)
    e = jnp.exp(s - m_new)                               # (bb, tT)
    l_ref[...] = alpha * l_ref[...] + jnp.sum(e, axis=-1, keepdims=True)
    # Unnormalized weighted sum: acc[b, d] += sum_t e[b, t] * c[b, t, d]
    pv = jnp.sum(e[:, :, None] * c, axis=1)              # (bb, D)
    acc_ref[...] = alpha * acc_ref[...] + pv
    m_ref[...] = m_new

    @pl.when(kt == pl.num_programs(1) - 1)
    def _():
        # Normalize once, after the weighted sum (EUP vrcp + 1 Newton step).
        l = l_ref[...]
        inv = pl.reciprocal(l, approx=True)
        inv = inv * (2.0 - l * inv)
        z_ref[...] = (acc_ref[...] * inv).astype(z_ref.dtype)


def _vmem_budget_bytes():
    """Scoped-VMEM request, derived from the device when possible."""
    cap = 64 * 1024 * 1024            # conservative default (v7x physical VMEM)
    try:
        cap = pltpu.get_tpu_info().vmem_capacity_bytes
    except Exception:
        pass
    # Leave headroom for the compiler / semaphores / register allocation.
    return min(int(cap * 0.6), 100 * 1024 * 1024)


def _pick_t_tile(bb, T, D, itemsize, block_t, c_budget):
    """Largest T tile (multiple of the sublane quantum, dividing T) whose
    double-buffered c block fits the budget.  Divisor => no ragged/garbage T
    tails flowing into the weighted sum."""
    sub = 8 if itemsize >= 4 else 16
    per_t = 2 * bb * D * itemsize                 # double-buffered c bytes per T row
    cap = min(block_t, max(sub, c_budget // max(per_t, 1)))
    if T <= cap:
        return T
    best = None
    d = sub
    while d <= cap:
        if T % d == 0:
            best = d
        d += sub
    # TODO(synk): if T has no multiple-of-{8,16} divisor <= cap, fall back to a
    # full-T block; ragged T tiles would additionally need the c tail masked.
    return best if best is not None else T


@functools.partial(jax.jit, static_argnames=("block_b", "block_t"))
def attention_general(q, c, weight, bias, lengths, *, block_b=64, block_t=512):
    """q: (B, 1, D), c: (B, T, D), weight: (D, D) torch layout (out, in),
    bias: (D,), lengths: (B,) int.  Returns z: (B, 1, D).

    `bias` is accepted for interface fidelity but adds a per-batch constant to
    every logit (softmax-invariant), so it never touches the kernel.
    """
    B, n_q, D = q.shape
    _, T, _ = c.shape
    assert n_q == 1, "Attention module spec: hidden is (B, 1, D)"
    del bias

    # Fold the Linear into the query: qw[b, :] = q[b, 0, :] @ W  (contract the
    # torch weight's *output* index).  One real MXU-shaped matmul in XLA.
    qw = (q[:, 0, :] @ weight).astype(jnp.float32)          # (B, D)
    len2 = lengths.astype(jnp.int32).reshape(B, 1)          # (B, 1)

    itemsize = jnp.dtype(c.dtype).itemsize
    budget = _vmem_budget_bytes()

    # Batch tile: full B if small (full-dim block), else a multiple of 8 so the
    # (bb, D)/(bb, 1) blocks satisfy the sublane rule.  No padding of any input:
    # a ragged tail becomes a Pallas boundary block with masked writes.
    if B <= block_b:
        bb = B
        if B >= 16:      # v7x megacore: give the "parallel" batch axis >= 2 steps
            bb = (((B + 1) // 2) + 7) // 8 * 8
    else:
        bb = max(8, (min(block_b, B) // 8) * 8)

    tt = _pick_t_tile(bb, T, D, itemsize, block_t, int(budget * 0.7))
    nb = pl.cdiv(B, bb)
    nt = T // tt

    grid_spec = pltpu.PrefetchScalarGridSpec(
        num_scalar_prefetch=0,
        grid=(nb, nt),
        in_specs=[
            pl.BlockSpec((bb, D), lambda i, k: (i, 0)),            # qW
            pl.BlockSpec((bb, 1), lambda i, k: (i, 0)),            # lengths
            pl.BlockSpec((bb, tt, D), lambda i, k: (i, k, 0)),     # c (streamed)
        ],
        out_specs=pl.BlockSpec((bb, D), lambda i, k: (i, 0)),
        scratch_shapes=[
            pltpu.VMEM((bb, 1), jnp.float32),    # running max
            pltpu.VMEM((bb, 1), jnp.float32),    # running sum(exp)
            pltpu.VMEM((bb, D), jnp.float32),    # unnormalized weighted sum
        ],
    )

    cost = pl.CostEstimate(
        flops=int(4 * B * T * D),                    # two muls + two adds per c element
        transcendentals=int(B * T),                  # exp
        bytes_accessed=int(B * T * D * itemsize      # stream c
                           + B * D * (4 + jnp.dtype(q.dtype).itemsize)  # qW in, z out
                           + B * 8),                 # lengths
    )

    z = pl.pallas_call(
        _attention_kernel,
        out_shape=jax.ShapeDtypeStruct((B, D), q.dtype),
        grid_spec=grid_spec,
        compiler_params=pltpu.CompilerParams(
            dimension_semantics=("parallel", "arbitrary"),
            vmem_limit_bytes=int(budget),
        ),
        cost_estimate=cost,
    )(qw, len2, c)

    return z.reshape(B, 1, D)


def _reference(q, c, weight, bias, lengths):
    """Pure-JAX reference mirroring the PyTorch forward (method='general')."""
    energy = jnp.einsum("btd,ed->bte", c, weight) + bias       # torch Linear: c @ W.T + b
    s = jnp.einsum("bqd,btd->bqt", q, energy)                  # (B, 1, T)
    T = c.shape[1]
    mask = jnp.where(
        jnp.arange(T)[None, None, :] < lengths[:, None, None], 0.0, -jnp.inf
    )
    s = s + mask
    w = jax.nn.softmax(s, axis=-1)
    return jnp.einsum("bqt,btd->bqd", w, c)


if __name__ == "__main__":
    B, T, D = 2, 8, 32

    key = jax.random.PRNGKey(0)
    k_q, k_c, k_w, k_b = jax.random.split(key, 4)

    hidden = jax.random.normal(k_q, (B, 1, D), dtype=jnp.float32)
    encoder_outputs = jax.random.normal(k_c, (B, T, D), dtype=jnp.float32)

    # Deterministic nn.Linear(D, D) parameters (torch layout: weight (out, in)).
    bound = 1.0 / (D ** 0.5)
    weight = jax.random.uniform(k_w, (D, D), jnp.float32, -bound, bound)
    bias = jax.random.uniform(k_b, (D,), jnp.float32, -bound, bound)

    # encoder_lengths: variable context lengths per batch element.
    lengths = jnp.array([T, T - 3], dtype=jnp.int32)

    z = attention_general(hidden, encoder_outputs, weight, bias, lengths)
    z = jax.block_until_ready(z)

    z_ref = _reference(hidden, encoder_outputs, weight, bias, lengths)
    assert z.shape == (B, 1, D)
    assert jnp.allclose(z, z_ref, atol=1e-4, rtol=1e-4), "mismatch vs reference"

    print("KERNEL_OK")
</pallas_src>

<mosaic_0001>
module attributes {stable_mosaic.version = 11 : i64} {
  func.func @_attention_kernel(%arg0: i32, %arg1: i32, %arg2: memref<2x32xf32, #tpu.memory_space<vmem>>, %arg3: memref<2x1xi32, #tpu.memory_space<vmem>>, %arg4: memref<2x8x32xf32, #tpu.memory_space<vmem>>, %arg5: memref<2x32xf32, #tpu.memory_space<vmem>>, %arg6: memref<2x1xf32, #tpu.memory_space<vmem>>, %arg7: memref<2x1xf32, #tpu.memory_space<vmem>>, %arg8: memref<2x32xf32, #tpu.memory_space<vmem>>) attributes {dimension_semantics = [#tpu.dimension_semantics<parallel>, #tpu.dimension_semantics<arbitrary>], iteration_bounds = array<i64: 1, 1>, scalar_prefetch = 0 : i64, scratch_operands = 3 : i64, tpu.core_type = #tpu.core_type<tc>, window_params = [{transform_indices = @transform_0, window_bounds = array<i64: 2, 32>}, {transform_indices = @transform_1, window_bounds = array<i64: 2, 1>}, {transform_indices = @transform_2, window_bounds = array<i64: 2, 8, 32>}, {transform_indices = @transform_3, window_bounds = array<i64: 2, 32>}]} {
    %c0_i32 = arith.constant 0 : i32
    %0 = arith.cmpi eq, %arg1, %c0_i32 : i32
    %1 = arith.extui %0 : i1 to i32
    %c0_i32_0 = arith.constant 0 : i32
    %2 = arith.cmpi ne, %1, %c0_i32_0 : i32
    scf.if %2 {
      %cst_25 = arith.constant 0xFF800000 : f32
      %46 = vector.broadcast %cst_25 : f32 to vector<2x1xf32>
      %c0_26 = arith.constant 0 : index
      %c0_27 = arith.constant 0 : index
      %47 = vector.load %arg6[%c0_26, %c0_27] : memref<2x1xf32, #tpu.memory_space<vmem>>, vector<2x1xf32>
      tpu.vector_store %arg6[%c0_26, %c0_27], %46 {strides = array<i32>} : memref<2x1xf32, #tpu.memory_space<vmem>>, vector<2x1xf32>,
      %cst_28 = arith.constant 0.000000e+00 : f32
      %48 = vector.broadcast %cst_28 : f32 to vector<2x1xf32>
      %c0_29 = arith.constant 0 : index
      %c0_30 = arith.constant 0 : index
      %49 = vector.load %arg7[%c0_29, %c0_30] : memref<2x1xf32, #tpu.memory_space<vmem>>, vector<2x1xf32>
      tpu.vector_store %arg7[%c0_29, %c0_30], %48 {strides = array<i32>} : memref<2x1xf32, #tpu.memory_space<vmem>>, vector<2x1xf32>,
      %cst_31 = arith.constant 0.000000e+00 : f32
      %50 = vector.broadcast %cst_31 : f32 to vector<2x32xf32>
      %c0_32 = arith.constant 0 : index
      %c0_33 = arith.constant 0 : index
      %51 = vector.load %arg8[%c0_32, %c0_33] : memref<2x32xf32, #tpu.memory_space<vmem>>, vector<2x32xf32>
      tpu.vector_store %arg8[%c0_32, %c0_33], %50 {strides = array<i32>} : memref<2x32xf32, #tpu.memory_space<vmem>>, vector<2x32xf32>,
    } else {
    }
    %c0 = arith.constant 0 : index
    %c0_1 = arith.constant 0 : index
    %3 = vector.load %arg2[%c0, %c0_1] : memref<2x32xf32, #tpu.memory_space<vmem>>, vector<2x32xf32>
    %c0_2 = arith.constant 0 : index
    %c0_3 = arith.constant 0 : index
    %c0_4 = arith.constant 0 : index
    %4 = vector.load %arg4[%c0_2, %c0_3, %c0_4] : memref<2x8x32xf32, #tpu.memory_space<vmem>>, vector<2x8x32xf32>
    %5 = vector.shape_cast %3 : vector<2x32xf32> to vector<2x1x32xf32>
    %6 = vector.broadcast %5 : vector<2x1x32xf32> to vector<2x8x32xf32>
    %7 = arith.mulf %6, %4 : vector<2x8x32xf32>
    %cst = arith.constant dense<0.000000e+00> : vector<2x8xf32>
    %8 = vector.multi_reduction <add>, %7, %cst [2] : vector<2x8x32xf32> to vector<2x8xf32>
    %c0_5 = arith.constant 0 : index
    %c0_6 = arith.constant 0 : index
    %9 = vector.load %arg3[%c0_5, %c0_6] : memref<2x1xi32, #tpu.memory_space<vmem>>, vector<2x1xi32>
    %c8_i32 = arith.constant 8 : i32
    %10 = arith.muli %arg1, %c8_i32 : i32
    %11 = tpu.iota {dimensions = array<i32: 1>} : vector<2x8xi32>
    %12 = vector.broadcast %10 : i32 to vector<2x8xi32>
    %13 = arith.addi %12, %11 : vector<2x8xi32>
    %14 = vector.broadcast %9 : vector<2x1xi32> to vector<2x8xi32>
    %15 = arith.cmpi slt, %13, %14 : vector<2x8xi32>
    %cst_7 = arith.constant -1.000000e+30 : f32
    %16 = vector.broadcast %cst_7 : f32 to vector<2x8xf32>
    %17 = arith.select %15, %8, %16 : vector<2x8xi1>, vector<2x8xf32>
    %c0_8 = arith.constant 0 : index
    %c0_9 = arith.constant 0 : index
    %18 = vector.load %arg6[%c0_8, %c0_9] : memref<2x1xf32, #tpu.memory_space<vmem>>, vector<2x1xf32>
    %cst_10 = arith.constant dense<0xFF800000> : vector<2xf32>
    %19 = vector.multi_reduction <maximumf>, %17, %cst_10 [1] : vector<2x8xf32> to vector<2xf32>
    %20 = vector.shape_cast %19 : vector<2xf32> to vector<2x1xf32>
    %21 = arith.maximumf %18, %20 : vector<2x1xf32>
    %22 = arith.subf %18, %21 : vector<2x1xf32>
    %23 = math.exp %22 : vector<2x1xf32>
    %24 = vector.broadcast %21 : vector<2x1xf32> to vector<2x8xf32>
    %25 = arith.subf %17, %24 : vector<2x8xf32>
    %26 = math.exp %25 : vector<2x8xf32>
    %c0_11 = arith.constant 0 : index
    %c0_12 = arith.constant 0 : index
    %27 = vector.load %arg7[%c0_11, %c0_12] : memref<2x1xf32, #tpu.memory_space<vmem>>, vector<2x1xf32>
    %28 = arith.mulf %23, %27 : vector<2x1xf32>
    %cst_13 = arith.constant dense<0.000000e+00> : vector<2xf32>
    %29 = vector.multi_reduction <add>, %26, %cst_13 [1] : vector<2x8xf32> to vector<2xf32>
    %30 = vector.shape_cast %29 : vector<2xf32> to vector<2x1xf32>
    %31 = arith.addf %28, %30 : vector<2x1xf32>
    %c0_14 = arith.constant 0 : index
    %c0_15 = arith.constant 0 : index
    %32 = vector.load %arg7[%c0_14, %c0_15] : memref<2x1xf32, #tpu.memory_space<vmem>>, vector<2x1xf32>
    tpu.vector_store %arg7[%c0_14, %c0_15], %31 {strides = array<i32>} : memref<2x1xf32, #tpu.memory_space<vmem>>, vector<2x1xf32>,
    %33 = vector.shape_cast %26 : vector<2x8xf32> to vector<2x8x1xf32>
    %34 = vector.broadcast %33 : vector<2x8x1xf32> to vector<2x8x32xf32>
    %35 = arith.mulf %34, %4 : vector<2x8x32xf32>
    %cst_16 = arith.constant dense<0.000000e+00> : vector<2x32xf32>
    %36 = vector.multi_reduction <add>, %35, %cst_16 [1] : vector<2x8x32xf32> to vector<2x32xf32>
    %c0_17 = arith.constant 0 : index
    %c0_18 = arith.constant 0 : index
    %37 = vector.load %arg8[%c0_17, %c0_18] : memref<2x32xf32, #tpu.memory_space<vmem>>, vector<2x32xf32>
    %38 = vector.broadcast %23 : vector<2x1xf32> to vector<2x32xf32>
    %39 = arith.mulf %38, %37 : vector<2x32xf32>
    %40 = arith.addf %39, %36 : vector<2x32xf32>
    %c0_19 = arith.constant 0 : index
    %c0_20 = arith.constant 0 : index
    %41 = vector.load %arg8[%c0_19, %c0_20] : memref<2x32xf32, #tpu.memory_space<vmem>>, vector<2x32xf32>
    tpu.vector_store %arg8[%c0_19, %c0_20], %40 {strides = array<i32>} : memref<2x32xf32, #tpu.memory_space<vmem>>, vector<2x32xf32>,
    %c0_21 = arith.constant 0 : index
    %c0_22 = arith.constant 0 : index
    %42 = vector.load %arg6[%c0_21, %c0_22] : memref<2x1xf32, #tpu.memory_space<vmem>>, vector<2x1xf32>
    tpu.vector_store %arg6[%c0_21, %c0_22], %21 {strides = array<i32>} : memref<2x1xf32, #tpu.memory_space<vmem>>, vector<2x1xf32>,
    %c0_i32_23 = arith.constant 0 : i32
    %43 = arith.cmpi eq, %arg1, %c0_i32_23 : i32
    %44 = arith.extui %43 : i1 to i32
    %c0_i32_24 = arith.constant 0 : i32
    %45 = arith.cmpi ne, %44, %c0_i32_24 : i32
    scf.if %45 {
      %c0_25 = arith.constant 0 : index
      %c0_26 = arith.constant 0 : index
      %46 = vector.load %arg7[%c0_25, %c0_26] : memref<2x1xf32, #tpu.memory_space<vmem>>, vector<2x1xf32>
      %47 = tpu.reciprocal %46 {approx = true} : vector<2x1xf32> -> vector<2x1xf32>
      %48 = arith.mulf %46, %47 : vector<2x1xf32>
      %cst_27 = arith.constant 2.000000e+00 : f32
      %49 = vector.broadcast %cst_27 : f32 to vector<2x1xf32>
      %50 = arith.subf %49, %48 : vector<2x1xf32>
      %51 = arith.mulf %47, %50 : vector<2x1xf32>
      %c0_28 = arith.constant 0 : index
      %c0_29 = arith.constant 0 : index
      %52 = vector.load %arg8[%c0_28, %c0_29] : memref<2x32xf32, #tpu.memory_space<vmem>>, vector<2x32xf32>
      %53 = vector.broadcast %51 : vector<2x1xf32> to vector<2x32xf32>
      %54 = arith.mulf %52, %53 : vector<2x32xf32>
      %c0_30 = arith.constant 0 : index
      %c0_31 = arith.constant 0 : index
      %55 = vector.load %arg5[%c0_30, %c0_31] : memref<2x32xf32, #tpu.memory_space<vmem>>, vector<2x32xf32>
      tpu.vector_store %arg5[%c0_30, %c0_31], %54 {strides = array<i32>} : memref<2x32xf32, #tpu.memory_space<vmem>>, vector<2x32xf32>,
    } else {
    }
    return
  }
  func.func @transform_0(%arg0: i32, %arg1: i32) -> (i32, i32) {
    %c0_i32 = arith.constant 0 : i32
    %c0_i32_0 = arith.constant 0 : i32
    return %arg0, %c0_i32 : i32, i32
  }
  func.func @transform_1(%arg0: i32, %arg1: i32) -> (i32, i32) {
    %c0_i32 = arith.constant 0 : i32
    %c0_i32_0 = arith.constant 0 : i32
    return %arg0, %c0_i32 : i32, i32
  }
  func.func @transform_2(%arg0: i32, %arg1: i32) -> (i32, i32, i32) {
    %c0_i32 = arith.constant 0 : i32
    %c0_i32_0 = arith.constant 0 : i32
    return %arg0, %arg1, %c0_i32 : i32, i32, i32
  }
  func.func @transform_3(%arg0: i32, %arg1: i32) -> (i32, i32) {
    %c0_i32 = arith.constant 0 : i32
    %c0_i32_0 = arith.constant 0 : i32
    return %arg0, %c0_i32 : i32, i32
  }
}

</mosaic_0001>

<llo_original>
// kernel: attention_general.1
$region0: #{attention_general.1}
  #allocation0 [shape = 'u32[]', space=smem, size = 0x4, offset = 0x4, fixed_abs, tag = 'smem constant byte address 0x4 - core index']
  #allocation1 [shape = 'u32[72,128]{1,0:T(1,128)}', space=vmem, size = 0x9000, scoped, tag = 'internal scratch']
  #allocation2 [shape = 'f32[2,1]{1,0:T(2,128)}', space=vmem, size = 0x400, scoped, tag = 'scratch operand']
  #allocation3 [shape = 'f32[2,1]{1,0:T(2,128)}', space=vmem, size = 0x400, scoped, tag = 'scratch operand']
  #allocation4 [shape = 'f32[2,32]{1,0:T(2,128)}', space=vmem, size = 0x400, scoped, tag = 'scratch operand']
  %s0 = inlined_call_operand.vmem [shape: f32[2,32], index: 0, kind: input, shape index: {}]
  %s1 = inlined_call_operand.vmem [shape: s32[2,1], index: 1, kind: input, shape index: {}]
  %s2 = inlined_call_operand.vmem [shape: f32[2,8,32], index: 2, kind: input, shape index: {}]
  %s3 = inlined_call_operand.hbm [shape: f32[2,32], index: 3, kind: output, shape index: {}]
  %s4 = sld [smem:[#allocation0]]
  $region30: #{attention_general.1} parent=0
    _
  %s6 = ssub.s32 1, %s4
  %s7 = scalar_select 0, %s6, %s4
  $region1: #{attention_general.1} parent=0
    #allocation5 [shape = 'u8[1024]{0}', space=vmem, size = 0x400, scoped, tag = 'output window, operand 0, single buffered']
    #allocation6 [shape = 's32[1]{0}', space=sflag, size = 0x4, scoped, tag = 'scoped memory for attention_general.1']
    %8 = vsyncpa [#allocation6], 0
    // Predicated region
    $region2: #{attention_general.1} parent=1 // pred_check
      _
    $region3: #{attention_general.1} parent=1 // pred_check_branch
      %10 = sbr.rel (0) target = $region5
    $region4: #{attention_general.1} parent=1 // pred_region
      _
    $region5: #{attention_general.1} parent=1 // pred_fallthru
      _
    // Predicated region
    $region6: #{attention_general.1} parent=1 // pred_check
      _
    $region7: #{attention_general.1} parent=1 // pred_check_branch
      %12 = sbr.rel (0) target = $region9
    $region8: #{attention_general.1} parent=1 // pred_region
      _
    $region9: #{attention_general.1} parent=1 // pred_fallthru
      _
    // Predicated region
    $region10: #{attention_general.1} parent=1 // pred_check
      _
    $region11: #{attention_general.1} parent=1 // pred_check_branch
      %14 = sbr.rel (0) target = $region13
    $region12: #{attention_general.1} parent=1 // pred_region
      _
    $region13: #{attention_general.1} parent=1 // pred_fallthru
      _
    %p15 = scmp.eq.s32.totalorder 0, 0
    // Predicated region
    $region14: #{attention_general.1} parent=1 // pred_check
      %p16 = pneg %p15
    $region15: #{attention_general.1} parent=1 // pred_check_branch
      %18 = sbr.rel (%p16) target = $region17
    $region16: #{attention_general.1} parent=1 // pred_region
      %vm19 = vcmask 1024
      %20 = vst.msk [vmem:[#allocation2] sm:$0x3] %vm19, -inf
      %21 = vst.msk [vmem:[#allocation3] sm:$0x3] %vm19, 0.0
      %vm22 = vcmask 254976
      %23 = vst.msk [vmem:[#allocation4] sm:$0x3] %vm22, 0.0
    $region17: #{attention_general.1} parent=1 // pred_fallthru
      _
    %v24 = vld [vmem:[%s0] sm:$0x3]
    %v25 = vld [vmem:[%s2] sm:$0xff]
    %v26 = vld [vmem:[%s2 + $0x8] sm:$0xff]
    %v28 = vrot.slane %v24, 1
    %v29 = vperm.slane %v24, 0
    %v30 = vperm.slane %v28, 0
    %v33 = vmul.f32 %v29, %v25
    %v34 = vmul.f32 %v30, %v26
    %vm35 = vcmask 261120
    %v36 = vsel %vm35, %v33, 0.0
    %37 = vadd.xlane.f32.xlu0 %v36
    %v38 = vpop.xlane.xlu0 %37
    %v39 = vsel %vm35, %v34, 0.0
    %40 = vadd.xlane.f32.xlu0 %v39
    %v41 = vpop.xlane.xlu0 %40
    %v42 = vld [vmem:[%s1] sm:$0x3]
    %s43 = smul.u32 0, 8
    %v44 = vlaneseq
    %v45 = vand.u32 %v44, 127
    %v46 = vstv %s43
    %v47 = vadd.s32 %v46, %v45
    %48 = vset.pattern.permute.xlu0 0
    %49 = vperm.xlu0 %48, %v42
    %v50 = vpop.permute.xlu0 %49
    %vm51 = vcmp.lt.s32.totalorder %v47, %v50
    %v54 = vperm.slane %v38, %v45
    %v55 = vperm.slane %v41, %v45
    %vm56 = vcmask 1041409
    %v57 = vsel %vm56, %v55, %v54
    %v59 = vsel %vm51, %v57, -1e+30
    %v60 = vld [vmem:[#allocation2] sm:$0x3]
    %vm61 = vcmask 58368
    %v62 = vsel %vm61, %v59, -inf
    %63 = vmax.xlane.f32.xlu0 %v62
    %v64 = vpop.xlane.xlu0 %63
    %v65 = vmax.f32 %v60, %v64
    %v66 = vsub.f32 %v60, %v65
    %v67 = vmul.f32 %v66, 1.442695
    %v68 = vpow.pop %v67
    %70 = vset.pattern.permute.xlu0 0
    %71 = vperm.xlu0 %70, %v65
    %v72 = vpop.permute.xlu0 %71
    %v74 = vsub.f32 %v59, %v72
    %v75 = vmul.f32 %v74, 1.442695
    %v76 = vpow.pop %v75
    %v77 = vld [vmem:[#allocation3] sm:$0x3]
    %v78 = vmul.f32 %v68, %v77
    %v79 = vsel %vm61, %v76, 0.0
    %80 = vadd.xlane.f32.xlu0 %v79
    %v81 = vpop.xlane.xlu0 %80
    %v82 = vadd.f32 %v78, %v81
    %vm83 = vcmask 1024
    %84 = vst.msk [vmem:[#allocation3] sm:$0x3] %vm83, %v82
    %v85 = vperm.slane %v76, 0
    %v86 = vlaneseq
    %v87 = vshrl.u32 %v86, 7
    %89 = vset.pattern.permute.xlu0 %v87
    %90 = vperm.xlu0 %89, %v85
    %v91 = vpop.permute.xlu0 %90
    %v92 = vperm.slane %v76, 1
    %v93 = vlaneseq
    %v94 = vshrl.u32 %v93, 7
    %96 = vset.pattern.permute.xlu0 %v94
    %97 = vperm.xlu0 %96, %v92
    %v98 = vpop.permute.xlu0 %97
    %v99 = vmul.f32 %v91, %v25
    %v100 = vmul.f32 %v98, %v26
    %v101 = vsel %vm35, %v99, 0.0
    %v102 = vrot.slane %v101, 4
    %v103 = vadd.f32 %v101, %v102
    %v104 = vrot.slane %v103, 2
    %v105 = vadd.f32 %v103, %v104
    %v106 = vrot.slane %v105, 1
    %v107 = vadd.f32 %v105, %v106
    %v108 = vsel %vm35, %v100, 0.0
    %v109 = vrot.slane %v108, 4
    %v110 = vadd.f32 %v108, %v109
    %v111 = vrot.slane %v110, 2
    %v112 = vadd.f32 %v110, %v111
    %v113 = vrot.slane %v112, 1
    %v114 = vadd.f32 %v112, %v113
    %v115 = vld [vmem:[#allocation4] sm:$0x3]
    %117 = vset.pattern.permute.xlu0 0
    %118 = vperm.xlu0 %117, %v68
    %v119 = vpop.permute.xlu0 %118
    %v121 = vmul.f32 %v119, %v115
    %v124 = vsel %vm56, %v114, %v107
    %v126 = vadd.f32 %v121, %v124
    %vm127 = vcmask 254976
    %128 = vst.msk [vmem:[#allocation4] sm:$0x3] %vm127, %v126
    %129 = vst.msk [vmem:[#allocation2] sm:$0x3] %vm83, %v65
    // Predicated region
    $region18: #{attention_general.1} parent=1 // pred_check
      %p130 = pneg %p15
    $region19: #{attention_general.1} parent=1 // pred_check_branch
      %132 = sbr.rel (%p130) target = $region21
    $region20: #{attention_general.1} parent=1 // pred_region
      %v133 = vld [vmem:[#allocation3] sm:$0x3]
      %v134 = vrcp.pop %v133
      %v135 = vmul.f32 %v133, %v134
      %v136 = vsub.f32 2.0, %v135
      %v137 = vmul.f32 %v134, %v136
      %v138 = vld [vmem:[#allocation4] sm:$0x3]
      %140 = vset.pattern.permute.xlu0 0
      %141 = vperm.xlu0 %140, %v137
      %v142 = vpop.permute.xlu0 %141
      %v144 = vmul.f32 %v138, %v142
      %145 = vst.msk [vmem:[#allocation5] sm:$0x3] %vm127, %v144
    $region21: #{attention_general.1} parent=1 // pred_fallthru
      _
    // Predicated region
    $region22: #{attention_general.1} parent=1 // pred_check
      _
    $region23: #{attention_general.1} parent=1 // pred_check_branch
      %147 = sbr.rel (0) target = $region25
    $region24: #{attention_general.1} parent=1 // pred_region
      %149 = vsyncadd [#allocation6], 0
      %s151 = sshll.u32 [#allocation5], 4
      %s152 = int_to_ptr.vmem [resolvable:$true] %s151
      %s153 = sshll.u32 %s3, 4
      %s154 = int_to_ptr.hbm [resolvable:$true] %s153
      %156 = dma.vmem_to_hbm [thread:$0]  %s152, 32, %s154, [#allocation6]
    $region25: #{attention_general.1} parent=1 // pred_fallthru
      _
    // Predicated region
    $region26: #{attention_general.1} parent=1 // pred_check
      _
    $region27: #{attention_general.1} parent=1 // pred_check_branch
      %158 = sbr.rel (0) target = $region29
    $region28: #{attention_general.1} parent=1 // pred_region
      %160 = dma.done [#allocation6], 32
    $region29: #{attention_general.1} parent=1 // pred_fallthru
      _
    %161 = vsyncpa [#allocation6], 1

</llo_original>
